<compile_context>
chip_gen: v5e
topology: v5e:2x2
jax: 0.10.0
libtpu: 0.0.40
codegen_flags: <defaults>
</compile_context>

<pallas_src>
import jax
import jax.numpy as jnp
from jax.experimental import pallas as pl
from jax.experimental.pallas import tpu as pltpu


def _round_up(x, m):
    return ((x + m - 1) // m) * m


def _mlp_kernel(x_ref, w1_ref, b1_ref, w2_ref, b2_ref, w3_ref, b3_ref, o_ref):
    # Layer 1: Linear(F, 2H) + ReLU   (bf16 MXU, f32 accumulate, f32 elementwise)
    h1 = jnp.dot(x_ref[...], w1_ref[...], preferred_element_type=jnp.float32)
    h1 = jnp.maximum(h1 + b1_ref[...], 0.0)
    # (Dropout -> identity at inference)
    # Layer 2: Linear(2H, H) + ReLU
    h2 = jnp.dot(h1.astype(w2_ref.dtype), w2_ref[...],
                 preferred_element_type=jnp.float32)
    h2 = jnp.maximum(h2 + b2_ref[...], 0.0)
    # (Dropout -> identity at inference)
    # Layer 3: Linear(H, O_padded)
    out = jnp.dot(h2.astype(w3_ref.dtype), w3_ref[...],
                  preferred_element_type=jnp.float32)
    o_ref[...] = (out + b3_ref[...]).astype(o_ref.dtype)


def ttl_emb_forward(x, params, *, block_rows=256, compute_dtype=jnp.bfloat16):
    """Fused forward pass of TTL_Emb_Model.

    x: (N, in_embedding_size) float32
    params: dict with w1 (F, 2H), b1 (1, 2H), w2 (2H, H), b2 (1, H),
            w3 (H, O), b3 (1, O)  -- all float32.
    """
    w1, b1, w2, b2, w3, b3 = (params[k] for k in ("w1", "b1", "w2", "b2", "w3", "b3"))
    n, feat = x.shape
    two_h = w1.shape[1]
    hid = w2.shape[1]
    out = w3.shape[1]
    out_dtype = x.dtype

    # --- Lane-dense output: pad the last Linear to a multiple of 128 lanes. ---
    out_p = _round_up(out, 128)
    if out_p != out:
        w3 = jnp.pad(w3, ((0, 0), (0, out_p - out)))
        b3 = jnp.pad(b3, ((0, 0), (0, out_p - out)))

    # --- Row tiling: big tiles to amortize per-step overhead, but try to keep
    #     at least 2 grid steps so v7x's 2 TensorCores both get work. ---
    bm = min(block_rows, max(8, _round_up(pl.cdiv(n, 2), 8)))
    n_p = _round_up(n, bm)
    if n_p != n:
        x = jnp.pad(x, ((0, n_p - n), (0, 0)))
    grid = (n_p // bm,)

    # --- bf16 activations/weights, f32 biases (elementwise path stays f32). ---
    x_c = x.astype(compute_dtype)
    w1c = w1.astype(compute_dtype)
    w2c = w2.astype(compute_dtype)
    w3c = w3.astype(compute_dtype)

    full = lambda shape: pl.BlockSpec(shape, lambda i: (0, 0))  # resident block

    # VMEM note (v7x, 64 MiB physical / 32 MiB scoped default): at production
    # sizes (F=1536, bm=256..512, bf16) the double-buffered x tile plus the
    # resident weights stay well under the scoped default, so we don't raise
    # vmem_limit_bytes here; re-check if F/H grow substantially.
    # TODO(synk): single-buffer the constant-index weight blocks
    # (pipeline_mode=pl.Buffered(1)) once the VMEM headroom matters at
    # production sizes.
    return pl.pallas_call(
        _mlp_kernel,
        out_shape=jax.ShapeDtypeStruct((n_p, out_p), out_dtype),
        grid_spec=pltpu.PrefetchScalarGridSpec(
            num_scalar_prefetch=0,
            grid=grid,
            in_specs=[
                pl.BlockSpec((bm, feat), lambda i: (i, 0)),  # x row tile
                full((feat, two_h)),   # w1 (bf16)
                full((1, two_h)),      # b1 (f32)
                full((two_h, hid)),    # w2 (bf16)
                full((1, hid)),        # b2 (f32)
                full((hid, out_p)),    # w3 (bf16, lane-padded)
                full((1, out_p)),      # b3 (f32, lane-padded)
            ],
            out_specs=pl.BlockSpec((bm, out_p), lambda i: (i, 0)),
        ),
        compiler_params=pltpu.CompilerParams(
            dimension_semantics=("parallel",),
        ),
    )(x_c, w1c, b1, w2c, b2, w3c, b3)[:n, :out]


def init_params(key, in_embedding_size, hidden_size, output_size):
    """Deterministic PyTorch-Linear-style init (uniform(-1/sqrt(fan_in), +))."""
    dims = [
        (in_embedding_size, hidden_size * 2),
        (hidden_size * 2, hidden_size),
        (hidden_size, output_size),
    ]
    params = {}
    for idx, (fan_in, fan_out) in enumerate(dims, start=1):
        key, kw, kb = jax.random.split(key, 3)
        bound = 1.0 / jnp.sqrt(jnp.float32(fan_in))
        params[f"w{idx}"] = jax.random.uniform(
            kw, (fan_in, fan_out), jnp.float32, -bound, bound
        )
        params[f"b{idx}"] = jax.random.uniform(
            kb, (1, fan_out), jnp.float32, -bound, bound
        )
    return params


def reference_forward(x, params, compute_dtype=jnp.float32):
    """Pure-JAX reference with the same precision policy as the kernel."""
    w1 = params["w1"].astype(compute_dtype)
    w2 = params["w2"].astype(compute_dtype)
    w3 = params["w3"].astype(compute_dtype)
    h1 = jnp.dot(x.astype(compute_dtype), w1, preferred_element_type=jnp.float32)
    h1 = jnp.maximum(h1 + params["b1"], 0.0)
    h2 = jnp.dot(h1.astype(compute_dtype), w2, preferred_element_type=jnp.float32)
    h2 = jnp.maximum(h2 + params["b2"], 0.0)
    out = jnp.dot(h2.astype(compute_dtype), w3, preferred_element_type=jnp.float32)
    return (out + params["b3"]).astype(x.dtype)


if __name__ == "__main__":
    # Small shapes consistent with the module (N x Feature MLP).
    N = 50                 # batch rows (deliberately not a multiple of the tile)
    IN_EMB = 96            # in_embedding_size (small stand-in for 1536)
    HIDDEN = 32            # net_param.ttl_model.hidden_size
    OUTPUT = 16            # net_param.ttl_model.output_size

    key = jax.random.PRNGKey(0)
    key, kx = jax.random.split(key)
    x = jax.random.normal(kx, (N, IN_EMB), jnp.float32)
    params = init_params(key, IN_EMB, HIDDEN, OUTPUT)

    y = ttl_emb_forward(x, params, block_rows=256)
    y = jax.block_until_ready(y)
    assert y.shape == (N, OUTPUT)

    # Matched-precision (bf16 matmuls, f32 accumulate) reference.
    y_ref = reference_forward(x, params, compute_dtype=jnp.bfloat16)
    assert jnp.allclose(y, y_ref, atol=1e-2, rtol=1e-2), "mismatch vs reference"

    print("KERNEL_OK")
</pallas_src>

<mosaic_0001>
module attributes {stable_mosaic.version = 11 : i64} {
  func.func @_mlp_kernel(%arg0: i32, %arg1: memref<32x96xbf16, #tpu.memory_space<vmem>>, %arg2: memref<96x64xbf16, #tpu.memory_space<vmem>>, %arg3: memref<1x64xf32, #tpu.memory_space<vmem>>, %arg4: memref<64x32xbf16, #tpu.memory_space<vmem>>, %arg5: memref<1x32xf32, #tpu.memory_space<vmem>>, %arg6: memref<32x128xbf16, #tpu.memory_space<vmem>>, %arg7: memref<1x128xf32, #tpu.memory_space<vmem>>, %arg8: memref<32x128xf32, #tpu.memory_space<vmem>>) attributes {dimension_semantics = [#tpu.dimension_semantics<parallel>], iteration_bounds = array<i64: 2>, scalar_prefetch = 0 : i64, scratch_operands = 0 : i64, tpu.core_type = #tpu.core_type<tc>, window_params = [{transform_indices = @transform_0, window_bounds = array<i64: 32, 96>}, {pipeline_mode = #tpu.pipeline_mode<synchronous>, transform_indices = @transform_1, window_bounds = array<i64: 96, 64>}, {pipeline_mode = #tpu.pipeline_mode<synchronous>, transform_indices = @transform_2, window_bounds = array<i64: 1, 64>}, {pipeline_mode = #tpu.pipeline_mode<synchronous>, transform_indices = @transform_3, window_bounds = array<i64: 64, 32>}, {pipeline_mode = #tpu.pipeline_mode<synchronous>, transform_indices = @transform_4, window_bounds = array<i64: 1, 32>}, {pipeline_mode = #tpu.pipeline_mode<synchronous>, transform_indices = @transform_5, window_bounds = array<i64: 32, 128>}, {pipeline_mode = #tpu.pipeline_mode<synchronous>, transform_indices = @transform_6, window_bounds = array<i64: 1, 128>}, {transform_indices = @transform_7, window_bounds = array<i64: 32, 128>}]} {
    %c0 = arith.constant 0 : index
    %c0_0 = arith.constant 0 : index
    %0 = vector.load %arg1[%c0, %c0_0] : memref<32x96xbf16, #tpu.memory_space<vmem>>, vector<32x96xbf16>
    %c0_1 = arith.constant 0 : index
    %c0_2 = arith.constant 0 : index
    %1 = vector.load %arg2[%c0_1, %c0_2] : memref<96x64xbf16, #tpu.memory_space<vmem>>, vector<96x64xbf16>
    %cst = arith.constant dense<0.000000e+00> : vector<32x64xf32>
    %2 = tpu.matmul %0, %1, %cst {dimension_numbers = #tpu.dot_dimension_numbers<[1], [0], [0], [1], [0, 0, 1, 1], [], []>} : vector<32x96xbf16>, vector<96x64xbf16>, vector<32x64xf32> -> vector<32x64xf32>
    %c0_3 = arith.constant 0 : index
    %c0_4 = arith.constant 0 : index
    %3 = vector.load %arg3[%c0_3, %c0_4] : memref<1x64xf32, #tpu.memory_space<vmem>>, vector<1x64xf32>
    %4 = vector.broadcast %3 : vector<1x64xf32> to vector<32x64xf32>
    %5 = arith.addf %2, %4 : vector<32x64xf32>
    %cst_5 = arith.constant 0.000000e+00 : f32
    %6 = vector.broadcast %cst_5 : f32 to vector<32x64xf32>
    %7 = arith.maximumf %5, %6 : vector<32x64xf32>
    %8 = arith.truncf %7 : vector<32x64xf32> to vector<32x64xbf16>
    %c0_6 = arith.constant 0 : index
    %c0_7 = arith.constant 0 : index
    %9 = vector.load %arg4[%c0_6, %c0_7] : memref<64x32xbf16, #tpu.memory_space<vmem>>, vector<64x32xbf16>
    %cst_8 = arith.constant dense<0.000000e+00> : vector<32x32xf32>
    %10 = tpu.matmul %8, %9, %cst_8 {dimension_numbers = #tpu.dot_dimension_numbers<[1], [0], [0], [1], [0, 0, 1, 1], [], []>} : vector<32x64xbf16>, vector<64x32xbf16>, vector<32x32xf32> -> vector<32x32xf32>
    %c0_9 = arith.constant 0 : index
    %c0_10 = arith.constant 0 : index
    %11 = vector.load %arg5[%c0_9, %c0_10] : memref<1x32xf32, #tpu.memory_space<vmem>>, vector<1x32xf32>
    %12 = vector.broadcast %11 : vector<1x32xf32> to vector<32x32xf32>
    %13 = arith.addf %10, %12 : vector<32x32xf32>
    %cst_11 = arith.constant 0.000000e+00 : f32
    %14 = vector.broadcast %cst_11 : f32 to vector<32x32xf32>
    %15 = arith.maximumf %13, %14 : vector<32x32xf32>
    %16 = arith.truncf %15 : vector<32x32xf32> to vector<32x32xbf16>
    %c0_12 = arith.constant 0 : index
    %c0_13 = arith.constant 0 : index
    %17 = vector.load %arg6[%c0_12, %c0_13] : memref<32x128xbf16, #tpu.memory_space<vmem>>, vector<32x128xbf16>
    %cst_14 = arith.constant dense<0.000000e+00> : vector<32x128xf32>
    %18 = tpu.matmul %16, %17, %cst_14 {dimension_numbers = #tpu.dot_dimension_numbers<[1], [0], [0], [1], [0, 0, 1, 1], [], []>} : vector<32x32xbf16>, vector<32x128xbf16>, vector<32x128xf32> -> vector<32x128xf32>
    %c0_15 = arith.constant 0 : index
    %c0_16 = arith.constant 0 : index
    %19 = vector.load %arg7[%c0_15, %c0_16] : memref<1x128xf32, #tpu.memory_space<vmem>>, vector<1x128xf32>
    %20 = vector.broadcast %19 : vector<1x128xf32> to vector<32x128xf32>
    %21 = arith.addf %18, %20 : vector<32x128xf32>
    %c0_17 = arith.constant 0 : index
    %c0_18 = arith.constant 0 : index
    %22 = vector.load %arg8[%c0_17, %c0_18] : memref<32x128xf32, #tpu.memory_space<vmem>>, vector<32x128xf32>
    tpu.vector_store %arg8[%c0_17, %c0_18], %21 {strides = array<i32>} : memref<32x128xf32, #tpu.memory_space<vmem>>, vector<32x128xf32>,
    return
  }
  func.func @transform_0(%arg0: i32) -> (i32, i32) {
    %c0_i32 = arith.constant 0 : i32
    %c0_i32_0 = arith.constant 0 : i32
    return %arg0, %c0_i32 : i32, i32
  }
  func.func @transform_1(%arg0: i32) -> (i32, i32) {
    %c0_i32 = arith.constant 0 : i32
    %c0_i32_0 = arith.constant 0 : i32
    %c0_i32_1 = arith.constant 0 : i32
    return %c0_i32, %c0_i32_0 : i32, i32
  }
  func.func @transform_2(%arg0: i32) -> (i32, i32) {
    %c0_i32 = arith.constant 0 : i32
    %c0_i32_0 = arith.constant 0 : i32
    %c0_i32_1 = arith.constant 0 : i32
    return %c0_i32, %c0_i32_0 : i32, i32
  }
  func.func @transform_3(%arg0: i32) -> (i32, i32) {
    %c0_i32 = arith.constant 0 : i32
    %c0_i32_0 = arith.constant 0 : i32
    %c0_i32_1 = arith.constant 0 : i32
    return %c0_i32, %c0_i32_0 : i32, i32
  }
  func.func @transform_4(%arg0: i32) -> (i32, i32) {
    %c0_i32 = arith.constant 0 : i32
    %c0_i32_0 = arith.constant 0 : i32
    %c0_i32_1 = arith.constant 0 : i32
    return %c0_i32, %c0_i32_0 : i32, i32
  }
  func.func @transform_5(%arg0: i32) -> (i32, i32) {
    %c0_i32 = arith.constant 0 : i32
    %c0_i32_0 = arith.constant 0 : i32
    %c0_i32_1 = arith.constant 0 : i32
    return %c0_i32, %c0_i32_0 : i32, i32
  }
  func.func @transform_6(%arg0: i32) -> (i32, i32) {
    %c0_i32 = arith.constant 0 : i32
    %c0_i32_0 = arith.constant 0 : i32
    %c0_i32_1 = arith.constant 0 : i32
    return %c0_i32, %c0_i32_0 : i32, i32
  }
  func.func @transform_7(%arg0: i32) -> (i32, i32) {
    %c0_i32 = arith.constant 0 : i32
    %c0_i32_0 = arith.constant 0 : i32
    return %arg0, %c0_i32 : i32, i32
  }
}

</mosaic_0001>

<llo_original>
// kernel: tpu_custom_call.1
$region0: #{tpu_custom_call.1}
  #allocation0 [shape = 'u32[]', space=smem, size = 0x4, offset = 0x4, fixed_abs, tag = 'smem constant byte address 0x4 - core index']
  #allocation1 [shape = 'u32[72,128]{1,0:T(1,128)}', space=vmem, size = 0x9000, scoped, tag = 'internal scratch']
  %s0 = inlined_call_operand.vmem [shape: bf16[64,96], index: 0, kind: input, shape index: {}]
  %s1 = inlined_call_operand.vmem [shape: bf16[96,64], index: 1, kind: input, shape index: {}]
  %s2 = inlined_call_operand.vmem [shape: f32[1,64], index: 2, kind: input, shape index: {}]
  %s3 = inlined_call_operand.vmem [shape: bf16[64,32], index: 3, kind: input, shape index: {}]
  %s4 = inlined_call_operand.vmem [shape: f32[1,32], index: 4, kind: input, shape index: {}]
  %s5 = inlined_call_operand.vmem [shape: bf16[32,128], index: 5, kind: input, shape index: {}]
  %s6 = inlined_call_operand.vmem [shape: f32[1,128], index: 6, kind: input, shape index: {}]
  %s7 = inlined_call_operand.hbm [shape: f32[64,128], index: 7, kind: output, shape index: {}]
  %s8 = sld [smem:[#allocation0]]
  $region61: #{tpu_custom_call.1} parent=0
    _
  %s10 = ssub.s32 1, %s8
  %s11 = scalar_select 0, %s10, %s8
  $region1: #{tpu_custom_call.1} parent=0
    #allocation2 [shape = 'u8[32768]{0}', space=vmem, size = 0x8000, scoped, tag = 'output window, operand 0']
    #allocation3 [shape = 's32[2]{0}', space=sflag, size = 0x8, scoped, tag = 'scoped memory for tpu_custom_call.1']
    %12 = vsyncpa [#allocation3], 0
    %s13 = scalar_lea.sflag [#allocation3], 1
    %14 = vsyncpa %s13, 0
    loop: start=0, step=1, limit=4
    $region2: #{tpu_custom_call.1} parent=1 // loop_pre_header
      _
    $region3: #{tpu_custom_call.1} parent=1 // loop_header
      %s16 = sphi 0, %s20
      %p17 = scmp.ge.s32.totalorder %s16, 4
      %s26 = sphi 0, %s28
      %s29 = sphi 0, %s26
      %s30 = sphi 0, %s29
      %s46 = sphi 0, %s30
      %s50 = sphi 0, %s50
      %s52 = sphi 0, %s50
      %s53 = sphi 0, %s52
      %s67 = sphi 0, %s53
      %s71 = sphi 0, %s71
      %s73 = sphi 0, %s71
      %s74 = sphi 0, %s73
      %s88 = sphi 0, %s74
      %s92 = sphi 0, %s92
      %s94 = sphi 0, %s92
      %s95 = sphi 0, %s94
      %s109 = sphi 0, %s95
      %s113 = sphi 0, %s113
      %s115 = sphi 0, %s113
      %s116 = sphi 0, %s115
      %s130 = sphi 0, %s116
      %s134 = sphi 0, %s134
      %s136 = sphi 0, %s134
      %s137 = sphi 0, %s136
      %s151 = sphi 0, %s137
      %s155 = sphi 0, %s155
      %s157 = sphi 0, %s155
      %s158 = sphi 0, %s157
      %s172 = sphi 0, %s158
      %s178 = sphi 0, %s180
      %s181 = sphi 0, %s178
      %s182 = sphi 0, %s181
      %s198 = sphi 0, %s182
    $region4: #{tpu_custom_call.1} parent=1 // loop_header_branch
      %19 = sbr.rel (%p17) target = $region8
    $region5: #{tpu_custom_call.1} parent=1 // loop_body
      %s21 = ssub.s32 %s16, 1
      %s22 = ssub.s32 %s16, 2
      %s23 = sadd.s32 %s16, 1
      %s24 = ssub.s32 %s16, %s23
      %p25 = scmp.eq.s32.totalorder %s24, 0
      %s27 = sadd.s32 %s26, 1
      %s28 = scalar_select %p25, %s26, %s27
      %p31 = pneg %p25
      %p32 = scmp.eq.s32.totalorder %s16, 1
      %p33 = por %p31, %p32
      %p34 = scmp.ne.s32.totalorder %s26, %s29
      %p35 = scmp.eq.s32.totalorder %s16, 0
      %p36 = por %p34, %p35
      %p37 = scmp.ne.s32.totalorder %s26, %s29
      %p38 = scmp.eq.s32.totalorder %s21, 1
      %p39 = por %p37, %p38
      %p40 = scmp.ne.s32.totalorder %s29, %s30
      %p41 = scmp.eq.s32.totalorder %s21, 0
      %p42 = por %p40, %p41
      %p43 = scmp.ne.s32.totalorder %s29, %s30
      %p44 = scmp.eq.s32.totalorder %s22, 1
      %p45 = por %p43, %p44
      %p47 = scmp.ne.s32.totalorder %s30, %s46
      %p48 = scmp.eq.s32.totalorder %s22, 0
      %p49 = por %p47, %p48
      %s51 = sadd.s32 %s50, 1
      %p54 = scmp.eq.s32.totalorder %s16, 1
      %p55 = scmp.ne.s32.totalorder %s50, %s52
      %p56 = scmp.eq.s32.totalorder %s16, 0
      %p57 = por %p55, %p56
      %p58 = scmp.ne.s32.totalorder %s50, %s52
      %p59 = scmp.eq.s32.totalorder %s21, 1
      %p60 = por %p58, %p59
      %p61 = scmp.ne.s32.totalorder %s52, %s53
      %p62 = scmp.eq.s32.totalorder %s21, 0
      %p63 = por %p61, %p62
      %p64 = scmp.ne.s32.totalorder %s52, %s53
      %p65 = scmp.eq.s32.totalorder %s22, 1
      %p66 = por %p64, %p65
      %p68 = scmp.ne.s32.totalorder %s53, %s67
      %p69 = scmp.eq.s32.totalorder %s22, 0
      %p70 = por %p68, %p69
      %s72 = sadd.s32 %s71, 1
      %p75 = scmp.eq.s32.totalorder %s16, 1
      %p76 = scmp.ne.s32.totalorder %s71, %s73
      %p77 = scmp.eq.s32.totalorder %s16, 0
      %p78 = por %p76, %p77
      %p79 = scmp.ne.s32.totalorder %s71, %s73
      %p80 = scmp.eq.s32.totalorder %s21, 1
      %p81 = por %p79, %p80
      %p82 = scmp.ne.s32.totalorder %s73, %s74
      %p83 = scmp.eq.s32.totalorder %s21, 0
      %p84 = por %p82, %p83
      %p85 = scmp.ne.s32.totalorder %s73, %s74
      %p86 = scmp.eq.s32.totalorder %s22, 1
      %p87 = por %p85, %p86
      %p89 = scmp.ne.s32.totalorder %s74, %s88
      %p90 = scmp.eq.s32.totalorder %s22, 0
      %p91 = por %p89, %p90
      %s93 = sadd.s32 %s92, 1
      %p96 = scmp.eq.s32.totalorder %s16, 1
      %p97 = scmp.ne.s32.totalorder %s92, %s94
      %p98 = scmp.eq.s32.totalorder %s16, 0
      %p99 = por %p97, %p98
      %p100 = scmp.ne.s32.totalorder %s92, %s94
      %p101 = scmp.eq.s32.totalorder %s21, 1
      %p102 = por %p100, %p101
      %p103 = scmp.ne.s32.totalorder %s94, %s95
      %p104 = scmp.eq.s32.totalorder %s21, 0
      %p105 = por %p103, %p104
      %p106 = scmp.ne.s32.totalorder %s94, %s95
      %p107 = scmp.eq.s32.totalorder %s22, 1
      %p108 = por %p106, %p107
      %p110 = scmp.ne.s32.totalorder %s95, %s109
      %p111 = scmp.eq.s32.totalorder %s22, 0
      %p112 = por %p110, %p111
      %s114 = sadd.s32 %s113, 1
      %p117 = scmp.eq.s32.totalorder %s16, 1
      %p118 = scmp.ne.s32.totalorder %s113, %s115
      %p119 = scmp.eq.s32.totalorder %s16, 0
      %p120 = por %p118, %p119
      %p121 = scmp.ne.s32.totalorder %s113, %s115
      %p122 = scmp.eq.s32.totalorder %s21, 1
      %p123 = por %p121, %p122
      %p124 = scmp.ne.s32.totalorder %s115, %s116
      %p125 = scmp.eq.s32.totalorder %s21, 0
      %p126 = por %p124, %p125
      %p127 = scmp.ne.s32.totalorder %s115, %s116
      %p128 = scmp.eq.s32.totalorder %s22, 1
      %p129 = por %p127, %p128
      %p131 = scmp.ne.s32.totalorder %s116, %s130
      %p132 = scmp.eq.s32.totalorder %s22, 0
      %p133 = por %p131, %p132
      %s135 = sadd.s32 %s134, 1
      %p138 = scmp.eq.s32.totalorder %s16, 1
      %p139 = scmp.ne.s32.totalorder %s134, %s136
      %p140 = scmp.eq.s32.totalorder %s16, 0
      %p141 = por %p139, %p140
      %p142 = scmp.ne.s32.totalorder %s134, %s136
      %p143 = scmp.eq.s32.totalorder %s21, 1
      %p144 = por %p142, %p143
      %p145 = scmp.ne.s32.totalorder %s136, %s137
      %p146 = scmp.eq.s32.totalorder %s21, 0
      %p147 = por %p145, %p146
      %p148 = scmp.ne.s32.totalorder %s136, %s137
      %p149 = scmp.eq.s32.totalorder %s22, 1
      %p150 = por %p148, %p149
      %p152 = scmp.ne.s32.totalorder %s137, %s151
      %p153 = scmp.eq.s32.totalorder %s22, 0
      %p154 = por %p152, %p153
      %s156 = sadd.s32 %s155, 1
      %p159 = scmp.eq.s32.totalorder %s16, 1
      %p160 = scmp.ne.s32.totalorder %s155, %s157
      %p161 = scmp.eq.s32.totalorder %s16, 0
      %p162 = por %p160, %p161
      %p163 = scmp.ne.s32.totalorder %s155, %s157
      %p164 = scmp.eq.s32.totalorder %s21, 1
      %p165 = por %p163, %p164
      %p166 = scmp.ne.s32.totalorder %s157, %s158
      %p167 = scmp.eq.s32.totalorder %s21, 0
      %p168 = por %p166, %p167
      %p169 = scmp.ne.s32.totalorder %s157, %s158
      %p170 = scmp.eq.s32.totalorder %s22, 1
      %p171 = por %p169, %p170
      %p173 = scmp.ne.s32.totalorder %s158, %s172
      %p174 = scmp.eq.s32.totalorder %s22, 0
      %p175 = por %p173, %p174
      %s176 = ssub.s32 %s16, %s23
      %p177 = scmp.eq.s32.totalorder %s176, 0
      %s179 = sadd.s32 %s178, 1
      %s180 = scalar_select %p177, %s178, %s179
      %p183 = pneg %p177
      %p184 = scmp.eq.s32.totalorder %s16, 1
      %p185 = por %p183, %p184
      %p186 = scmp.ne.s32.totalorder %s178, %s181
      %p187 = scmp.eq.s32.totalorder %s16, 0
      %p188 = por %p186, %p187
      %p189 = scmp.ne.s32.totalorder %s178, %s181
      %p190 = scmp.eq.s32.totalorder %s21, 1
      %p191 = por %p189, %p190
      %p192 = scmp.ne.s32.totalorder %s181, %s182
      %p193 = scmp.eq.s32.totalorder %s21, 0
      %p194 = por %p192, %p193
      %p195 = scmp.ne.s32.totalorder %s181, %s182
      %p196 = scmp.eq.s32.totalorder %s22, 1
      %p197 = por %p195, %p196
      %p199 = scmp.ne.s32.totalorder %s182, %s198
      %p200 = scmp.eq.s32.totalorder %s22, 0
      %p201 = por %p199, %p200
      %p202 = scmp.le.s32.totalorder 1, %s16
      %p203 = scmp.lt.s32.totalorder %s16, 3
      %p204 = pnand %p202, %p203
      %p205 = pneg %p204
      // Predicated region
      $region9: #{tpu_custom_call.1} parent=5 // pred_check
        _
      $region10: #{tpu_custom_call.1} parent=5 // pred_check_branch
        %207 = sbr.rel (%p204) target = $region12
      $region11: #{tpu_custom_call.1} parent=5 // pred_region
        %s208 = ssub.s32 %s16, 1
        // Predicated region
        $region13: #{tpu_custom_call.1} parent=11 // pred_check
          %p209 = pneg %p63
        $region14: #{tpu_custom_call.1} parent=11 // pred_check_branch
          %211 = sbr.rel (%p209) target = $region16
        $region15: #{tpu_custom_call.1} parent=11 // pred_region
          _
        $region16: #{tpu_custom_call.1} parent=11 // pred_fallthru
          _
        // Predicated region
        $region17: #{tpu_custom_call.1} parent=11 // pred_check
          %p212 = pneg %p84
        $region18: #{tpu_custom_call.1} parent=11 // pred_check_branch
          %214 = sbr.rel (%p212) target = $region20
        $region19: #{tpu_custom_call.1} parent=11 // pred_region
          _
        $region20: #{tpu_custom_call.1} parent=11 // pred_fallthru
          _
        // Predicated region
        $region21: #{tpu_custom_call.1} parent=11 // pred_check
          %p215 = pneg %p105
        $region22: #{tpu_custom_call.1} parent=11 // pred_check_branch
          %217 = sbr.rel (%p215) target = $region24
        $region23: #{tpu_custom_call.1} parent=11 // pred_region
          _
        $region24: #{tpu_custom_call.1} parent=11 // pred_fallthru
          _
        // Predicated region
        $region25: #{tpu_custom_call.1} parent=11 // pred_check
          %p218 = pneg %p126
        $region26: #{tpu_custom_call.1} parent=11 // pred_check_branch
          %220 = sbr.rel (%p218) target = $region28
        $region27: #{tpu_custom_call.1} parent=11 // pred_region
          _
        $region28: #{tpu_custom_call.1} parent=11 // pred_fallthru
          _
        // Predicated region
        $region29: #{tpu_custom_call.1} parent=11 // pred_check
          %p221 = pneg %p147
        $region30: #{tpu_custom_call.1} parent=11 // pred_check_branch
          %223 = sbr.rel (%p221) target = $region32
        $region31: #{tpu_custom_call.1} parent=11 // pred_region
          _
        $region32: #{tpu_custom_call.1} parent=11 // pred_fallthru
          _
        // Predicated region
        $region33: #{tpu_custom_call.1} parent=11 // pred_check
          %p224 = pneg %p168
        $region34: #{tpu_custom_call.1} parent=11 // pred_check_branch
          %226 = sbr.rel (%p224) target = $region36
        $region35: #{tpu_custom_call.1} parent=11 // pred_region
          _
        $region36: #{tpu_custom_call.1} parent=11 // pred_fallthru
          _
      $region12: #{tpu_custom_call.1} parent=5 // pred_fallthru
        _
      %p227 = scmp.lt.s32.totalorder %s16, 2
      // Predicated region
      $region37: #{tpu_custom_call.1} parent=5 // pred_check
        %p228 = pneg %p227
      $region38: #{tpu_custom_call.1} parent=5 // pred_check_branch
        %230 = sbr.rel (%p228) target = $region40
      $region39: #{tpu_custom_call.1} parent=5 // pred_region
        // Predicated region
        $region41: #{tpu_custom_call.1} parent=39 // pred_check
          %p231 = pneg %p36
        $region42: #{tpu_custom_call.1} parent=39 // pred_check_branch
          %233 = sbr.rel (%p231) target = $region44
        $region43: #{tpu_custom_call.1} parent=39 // pred_region
          %s234 = smul.u32 4, %s16
          %p235 = scmp.lt.s32.totalorder %s234, 7
          %s236 = scalar_select %p235, %s234, 7
          %s237 = smul.addr %s236, 4
          %s238 = scalar_lea.vmem %s0, %s237
          %s239 = smul.u32 4, %s16
        $region44: #{tpu_custom_call.1} parent=39 // pred_fallthru
          _
      $region40: #{tpu_custom_call.1} parent=5 // pred_fallthru
        _
      %p240 = scmp.le.s32.totalorder 1, %s16
      %p241 = scmp.lt.s32.totalorder %s16, 3
      %p242 = pnand %p240, %p241
      %p243 = pneg %p242
      // Predicated region
      $region45: #{tpu_custom_call.1} parent=5 // pred_check
        _
      $region46: #{tpu_custom_call.1} parent=5 // pred_check_branch
        %245 = sbr.rel (%p242) target = $region48
      $region47: #{tpu_custom_call.1} parent=5 // pred_region
        %s246 = ssub.s32 %s16, 1
        %s247 = smul.u32 4, %s21
        %p248 = scmp.lt.s32.totalorder %s247, 7
        %s249 = scalar_select %p248, %s247, 7
        %s250 = smul.addr %s249, 4
        %s251 = scalar_lea.vmem %s0, %s250
        %p252 = pneg %p42
        %p253 = pneg %p39
        %p254 = pneg %p63
        %p255 = pneg %p60
        %p256 = pneg %p84
        %p257 = pneg %p81
        %p258 = pneg %p105
        %p259 = pneg %p102
        %p260 = pneg %p126
        %p261 = pneg %p123
        %p262 = pneg %p147
        %p263 = pneg %p144
        %p264 = pneg %p168
        %p265 = pneg %p165
        %p266 = pneg %p194
        %p267 = pneg %p191
        %s268 = sand.u32 %s181, 1
        %s269 = scalar_lea.sflag [#allocation3], %s268
        %s270 = sand.u32 %s181, 1
        %s271 = smul.addr %s270, 32
        %s272 = scalar_lea.vmem [#allocation2], %s271
        %s273 = smul.u32 4, %s21
        %p274 = scmp.lt.s32.totalorder %s273, 7
        %s275 = scalar_select %p274, %s273, 7
        %s276 = smul.addr %s275, 4
        %s277 = scalar_lea.vmem %s0, %s276
        %s278 = smul.u32 4, %s21
        %s279 = smul.u32 4, %s21
        %v281 = vld [vmem:[%s277] sm:$0xf]
        %v282 = vld [vmem:[%s277 + $0x4] sm:$0xf]
        %v283 = vld [vmem:[%s277 + $0x8] sm:$0xf]
        %v284 = vld [vmem:[%s277 + $0xc] sm:$0xf]
        %v285 = vld [vmem:[%s1] sm:$0xf]
        %v286 = vld [vmem:[%s1 + $0x4] sm:$0xf]
        %v287 = vld [vmem:[%s1 + $0x8] sm:$0xf]
        %v288 = vld [vmem:[%s1 + $0xc] sm:$0xf]
        %v289 = vld [vmem:[%s1 + $0x10] sm:$0xf]
        %v290 = vld [vmem:[%s1 + $0x14] sm:$0xf]
        %v291 = vld [vmem:[%s1 + $0x18] sm:$0xf]
        %v292 = vld [vmem:[%s1 + $0x1c] sm:$0xf]
        %v293 = vld [vmem:[%s1 + $0x20] sm:$0xf]
        %v294 = vld [vmem:[%s1 + $0x24] sm:$0xf]
        %v295 = vld [vmem:[%s1 + $0x28] sm:$0xf]
        %v296 = vld [vmem:[%s1 + $0x2c] sm:$0xf]
        %v297 = vld [vmem:[%s2] sm:$0x1]
        %v299 = vperm.slane %v297, 0
        %v305 = vunpack.c.l.b16 %v281
        %v306 = vunpack.c.l.b16 %v282
        %v307 = vunpack.c.l.b16 %v283
        %v308 = vunpack.c.l.b16 %v284
        %v309 = vpack.c.b16 %v306, %v305
        %v310 = vpack.c.b16 %v308, %v307
        %v323 = vunpack.c.l.b16 %v285
        %v324 = vunpack.c.l.b16 %v286
        %v325 = vunpack.c.l.b16 %v287
        %v326 = vunpack.c.l.b16 %v288
        %v327 = vunpack.c.l.b16 %v289
        %v328 = vunpack.c.l.b16 %v290
        %v329 = vunpack.c.l.b16 %v291
        %v330 = vunpack.c.l.b16 %v292
        %v331 = vunpack.c.l.b16 %v293
        %v332 = vunpack.c.l.b16 %v294
        %v333 = vunpack.c.l.b16 %v295
        %v334 = vunpack.c.l.b16 %v296
        %v335 = vpack.c.b16 %v324, %v323
        %v336 = vpack.c.b16 %v326, %v325
        %v337 = vpack.c.b16 %v328, %v327
        %v338 = vpack.c.b16 %v330, %v329
        %v339 = vpack.c.b16 %v332, %v331
        %v340 = vpack.c.b16 %v334, %v333
        %vm347 = vcmask 785408
        %v349 = vsel %vm347, %v309, 0
        %v352 = vsel %vm347, %v310, 0
        %354 = vmatpush.bf16.msra.mxu0 0
        %355 = vmatpush.bf16.msra.mxu0 0
        %356 = vmatpush.bf16.msra.mxu0 %v340
        %357 = vmatpush.bf16.msra.mxu0 %v339
        %358 = vmatpush.bf16.msra.mxu0 %v338
        %359 = vmatpush.bf16.msra.mxu0 %v337
        %360 = vmatpush.bf16.msra.mxu0 %v336
        %361 = vmatpush.bf16.msra.mxu0 %v335
        %362 = vmatmul.bf16.gmra.mxu0 %v349
        %v363 = vpop.f32.mrf.mxu0
        %v364 = vadd.f32 %v299, %v363
        %v365 = vpop.f32.mrf.mxu0
        %v366 = vadd.f32 %v299, %v365
        %367 = vmatmul.bf16.gmra.mxu0 %v352
        %v368 = vpop.f32.mrf.mxu0
        %v369 = vadd.f32 %v299, %v368
        %v370 = vpop.f32.mrf.mxu0
        %v371 = vadd.f32 %v299, %v370
        %372 = vdwg.mxu0
        %v373 = vmax.f32 %v364, 0.0
        %v374 = vmax.f32 %v366, 0.0
        %v375 = vmax.f32 %v369, 0.0
        %v376 = vmax.f32 %v371, 0.0
        %v377 = vpack.c.bf16 %v374, %v373
        %v378 = vpack.c.bf16 %v376, %v375
        %v379 = vld [vmem:[%s3] sm:$0xf]
        %v380 = vld [vmem:[%s3 + $0x4] sm:$0xf]
        %v381 = vld [vmem:[%s3 + $0x8] sm:$0xf]
        %v382 = vld [vmem:[%s3 + $0xc] sm:$0xf]
        %v383 = vld [vmem:[%s3 + $0x10] sm:$0xf]
        %v384 = vld [vmem:[%s3 + $0x14] sm:$0xf]
        %v385 = vld [vmem:[%s3 + $0x18] sm:$0xf]
        %v386 = vld [vmem:[%s3 + $0x1c] sm:$0xf]
        %v387 = vld [vmem:[%s4] sm:$0x1]
        %v389 = vperm.slane %v387, 0
        %v399 = vunpack.c.l.b16 %v379
        %v400 = vunpack.c.l.b16 %v380
        %v401 = vunpack.c.l.b16 %v381
        %v402 = vunpack.c.l.b16 %v382
        %v403 = vunpack.c.l.b16 %v383
        %v404 = vunpack.c.l.b16 %v384
        %v405 = vunpack.c.l.b16 %v385
        %v406 = vunpack.c.l.b16 %v386
        %v407 = vpack.c.b16 %v400, %v399
        %v408 = vpack.c.b16 %v402, %v401
        %v409 = vpack.c.b16 %v404, %v403
        %v410 = vpack.c.b16 %v406, %v405
        %vm415 = vcmask 523264
        %v417 = vsel %vm415, %v377, 0
        %v420 = vsel %vm415, %v378, 0
        %422 = vmatpush.bf16.msra.mxu0 0
        %423 = vmatpush.bf16.msra.mxu0 0
        %424 = vmatpush.bf16.msra.mxu0 0
        %425 = vmatpush.bf16.msra.mxu0 0
        %426 = vmatpush.bf16.msra.mxu0 %v410
        %427 = vmatpush.bf16.msra.mxu0 %v409
        %428 = vmatpush.bf16.msra.mxu0 %v408
        %429 = vmatpush.bf16.msra.mxu0 %v407
        %430 = vmatmul.bf16.gmra.mxu0 %v417
        %v431 = vpop.f32.mrf.mxu0
        %v432 = vadd.f32 %v389, %v431
        %v433 = vpop.f32.mrf.mxu0
        %v434 = vadd.f32 %v389, %v433
        %435 = vmatmul.bf16.gmra.mxu0 %v420
        %v436 = vpop.f32.mrf.mxu0
        %v437 = vadd.f32 %v389, %v436
        %v438 = vpop.f32.mrf.mxu0
        %v439 = vadd.f32 %v389, %v438
        %440 = vdwg.mxu0
        %v441 = vmax.f32 %v432, 0.0
        %v442 = vmax.f32 %v434, 0.0
        %v443 = vmax.f32 %v437, 0.0
        %v444 = vmax.f32 %v439, 0.0
        %v445 = vpack.c.bf16 %v442, %v441
        %v446 = vpack.c.bf16 %v444, %v443
        %v447 = vld [vmem:[%s5] sm:$0xf]
        %v448 = vld [vmem:[%s5 + $0x4] sm:$0xf]
        %v449 = vld [vmem:[%s5 + $0x8] sm:$0xf]
        %v450 = vld [vmem:[%s5 + $0xc] sm:$0xf]
        %v451 = vld [vmem:[%s6] sm:$0x1]
        %v453 = vperm.slane %v451, 0
        %v459 = vunpack.c.l.b16 %v447
        %v460 = vunpack.c.l.b16 %v448
        %v461 = vunpack.c.l.b16 %v449
        %v462 = vunpack.c.l.b16 %v450
        %v463 = vpack.c.b16 %v460, %v459
        %v464 = vpack.c.b16 %v462, %v461
        %vm467 = vcmask 261120
        %v469 = vsel %vm467, %v445, 0
        %v472 = vsel %vm467, %v446, 0
        %474 = vmatpush.bf16.msra.mxu0 0
        %475 = vmatpush.bf16.msra.mxu0 0
        %476 = vmatpush.bf16.msra.mxu0 0
        %477 = vmatpush.bf16.msra.mxu0 0
        %478 = vmatpush.bf16.msra.mxu0 0
        %479 = vmatpush.bf16.msra.mxu0 0
        %480 = vmatpush.bf16.msra.mxu0 %v464
        %481 = vmatpush.bf16.msra.mxu0 %v463
        %482 = vmatmul.bf16.gmra.mxu0 %v469
        %v483 = vpop.f32.mrf.mxu0
        %v484 = vadd.f32 %v453, %v483
        %v485 = vpop.f32.mrf.mxu0
        %v486 = vadd.f32 %v453, %v485
        %487 = vmatmul.bf16.gmra.mxu0 %v472
        %v488 = vpop.f32.mrf.mxu0
        %v489 = vadd.f32 %v453, %v488
        %v490 = vpop.f32.mrf.mxu0
        %v491 = vadd.f32 %v453, %v490
        %492 = vdwg.mxu0
        %493 = vst [vmem:[%s272] sm:$0xff] %v484
        %494 = vst [vmem:[%s272 + $0x8] sm:$0xff] %v486
        %495 = vst [vmem:[%s272 + $0x10] sm:$0xff] %v489
        %496 = vst [vmem:[%s272 + $0x18] sm:$0xff] %v491
        %s497 = sand.u32 %s181, 1
        %s498 = scalar_lea.sflag [#allocation3], %s497
        %s499 = sand.u32 %s181, 1
        %s500 = smul.addr %s499, 32
        %s501 = scalar_lea.vmem [#allocation2], %s500
        // Predicated region
        $region49: #{tpu_custom_call.1} parent=47 // pred_check
          %p502 = pneg %p191
        $region50: #{tpu_custom_call.1} parent=47 // pred_check_branch
          %504 = sbr.rel (%p502) target = $region52
        $region51: #{tpu_custom_call.1} parent=47 // pred_region
          %s505 = smul.u32 4, %s21
          %507 = vsyncadd %s498, 0
          %s508 = smul.addr %s505, 8
          %s509 = scalar_lea.hbm %s7, %s508
          %s510 = sshll.u32 %s501, 4
          %s511 = int_to_ptr.vmem [resolvable:$true] %s510
          %s512 = sshll.u32 %s509, 4
          %s513 = int_to_ptr.hbm [resolvable:$true] %s512
          %518 = dma.vmem_to_hbm [thread:$0]  %s511, 512, %s513, %s498, 128, 128, 8
        $region52: #{tpu_custom_call.1} parent=47 // pred_fallthru
          _
      $region48: #{tpu_custom_call.1} parent=5 // pred_fallthru
        _
      %p519 = scmp.le.s32.totalorder 2, %s16
      // Predicated region
      $region53: #{tpu_custom_call.1} parent=5 // pred_check
        %p520 = pneg %p519
      $region54: #{tpu_custom_call.1} parent=5 // pred_check_branch
        %522 = sbr.rel (%p520) target = $region56
      $region55: #{tpu_custom_call.1} parent=5 // pred_region
        %s523 = ssub.s32 %s16, 2
        // Predicated region
        $region57: #{tpu_custom_call.1} parent=55 // pred_check
          %p524 = pneg %p197
        $region58: #{tpu_custom_call.1} parent=55 // pred_check_branch
          %526 = sbr.rel (%p524) target = $region60
        $region59: #{tpu_custom_call.1} parent=55 // pred_region
          %s527 = sand.u32 %s182, 1
          %s528 = scalar_lea.sflag [#allocation3], %s527
          %s529 = sand.u32 %s182, 1
          %s530 = smul.addr %s529, 32
          %s531 = scalar_lea.vmem [#allocation2], %s530
          %533 = dma.done %s528, 512
        $region60: #{tpu_custom_call.1} parent=55 // pred_fallthru
          _
      $region56: #{tpu_custom_call.1} parent=5 // pred_fallthru
        _
    $region6: #{tpu_custom_call.1} parent=1 // loop_footer
      %s20 = sadd.s32 1, %s16
    $region7: #{tpu_custom_call.1} parent=1 // loop_footer_branch
      %15 = sbr.rel target = $region3
    $region8: #{tpu_custom_call.1} parent=1 // loop_exit
      _
    %534 = vsyncpa [#allocation3], 1
    %s535 = scalar_lea.sflag [#allocation3], 1
    %536 = vsyncpa %s535, 1

</llo_original>
